<compile_context>
chip_gen: v5e
topology: v5e:2x2
jax: 0.10.0
libtpu: 0.0.40
codegen_flags: <defaults>
</compile_context>

<pallas_src>
import math

import jax
import jax.numpy as jnp
from jax.experimental import pallas as pl
from jax.experimental.pallas import tpu as pltpu


def _inverse_dft_mats(L: int, dtype=jnp.float32):
    # W[a, b] = (1/L) * exp(+2*pi*i*a*b/L)  ->  (cos part, sin part); symmetric.
    idx = jnp.arange(L, dtype=jnp.float32)
    ang = (2.0 * math.pi / L) * jnp.outer(idx, idx)
    c = (jnp.cos(ang) / L).astype(dtype)
    s = (jnp.sin(ang) / L).astype(dtype)
    return c, s


def _make_kernel(tb: int, n: int):
    """Kernel over a (tb*n, M) slab of the flattened (B*N, M) input."""

    def kernel(x_ref, cm_ref, nsm_ref, cn_ref, sn_ref, o_ref):
        xf = x_ref[...]  # (tb*n, M), f32

        # Stage A: dim=-1 inverse DFT on the whole slab (big MXU matmuls).
        a = jnp.dot(xf, cm_ref[...], preferred_element_type=jnp.float32)   # X @ C_M
        b = jnp.dot(xf, nsm_ref[...], preferred_element_type=jnp.float32)  # X @ (-S_M)

        cn = cn_ref[...]
        sn = sn_ref[...]

        # Stage B: dim=-2 inverse DFT per batch inside the tile (static unroll,
        # tb is small). real(z) = C_N a + S_N b  (= C_N X C_M - S_N X S_M).
        for t in range(tb):
            r0 = t * n
            at = a[r0:r0 + n, :]
            bt = b[r0:r0 + n, :]
            z = (jnp.dot(cn, at, preferred_element_type=jnp.float32)
                 + jnp.dot(sn, bt, preferred_element_type=jnp.float32))
            o_ref[r0:r0 + n, :] = z.astype(o_ref.dtype)

    return kernel


def _choose_batch_tile(B: int, N: int, M: int,
                       target_rows: int = 512,
                       max_block_bytes: int = 8 << 20) -> int:
    """How many batches per grid step. Block rows = TB*N; keep them sublane
    aligned (multiple of 8) unless the block covers the full array."""
    best = None
    for tb in range(1, B + 1):
        if B % tb:
            continue
        rows = tb * N
        legal = (rows % 8 == 0) or (tb == B)
        if not legal:
            continue
        if tb > 1 and (rows > max(target_rows, N) or rows * M * 4 > max_block_bytes):
            continue
        best = tb
    return B if best is None else best


def ifft2d_layer(hidden_state: jax.Array) -> jax.Array:
    """Equivalent of IFFT2DLayer.forward for a real (..., N, M) input."""
    assert hidden_state.ndim >= 2, "expected at least 2 dims (..., N, M)"
    orig_shape = hidden_state.shape
    N, M = orig_shape[-2], orig_shape[-1]
    B = 1
    for d in orig_shape[:-2]:
        B *= int(d)

    x = hidden_state.astype(jnp.float32).reshape(B, N, M)  # fp32 math (autocast off)

    cn, sn = _inverse_dft_mats(N)
    cm, sm = _inverse_dft_mats(M)
    nsm = -sm  # fold the minus sign host-side -> accumulating adds in-kernel

    TB = _choose_batch_tile(B, N, M)
    grid = (B // TB,)
    block_rows = TB * N

    # Flatten batch into rows so stage A is one big (TB*N, M) @ (M, M) matmul.
    x2d = x.reshape(B * N, M)

    # Bounded scoped-VMEM limit: double-buffered in/out blocks, the four DFT
    # weight tiles, plus f32 temporaries. Capped at 64 MiB (v7x physical VMEM).
    in_block_bytes = block_rows * M * 4
    weight_bytes = (2 * M * M + 2 * N * N) * 4
    vmem_limit = int(min(64 * 1024 * 1024,
                         max(16 * 1024 * 1024,
                             8 * in_block_bytes + 4 * weight_bytes + (4 << 20))))

    flops = 4 * B * N * M * (M + N)                      # 2 K=M dots + 2 K=N dots
    bytes_accessed = 4 * (2 * B * N * M + 2 * M * M + 2 * N * N)

    out2d = pl.pallas_call(
        _make_kernel(TB, N),
        out_shape=jax.ShapeDtypeStruct((B * N, M), jnp.float32),
        grid_spec=pltpu.PrefetchScalarGridSpec(
            num_scalar_prefetch=0,
            grid=grid,
            in_specs=[
                pl.BlockSpec((block_rows, M), lambda i: (i, 0)),  # x slab
                pl.BlockSpec((M, M), lambda i: (0, 0)),           # C_M
                pl.BlockSpec((M, M), lambda i: (0, 0)),           # -S_M
                pl.BlockSpec((N, N), lambda i: (0, 0)),           # C_N
                pl.BlockSpec((N, N), lambda i: (0, 0)),           # S_N
            ],
            out_specs=pl.BlockSpec((block_rows, M), lambda i: (i, 0)),
        ),
        compiler_params=pltpu.CompilerParams(
            dimension_semantics=("parallel",),
            vmem_limit_bytes=vmem_limit,
        ),
        cost_estimate=pl.CostEstimate(
            flops=int(flops), transcendentals=0, bytes_accessed=int(bytes_accessed)),
    )(x2d, cm, nsm, cn, sn)

    return out2d.reshape(orig_shape)


if __name__ == "__main__":
    key = jax.random.PRNGKey(0)
    B, N, M = 2, 8, 32
    hidden_state = jax.random.normal(key, (B, N, M), dtype=jnp.float32)

    out = ifft2d_layer(hidden_state)
    out = jax.block_until_ready(out)

    # Reference: ifft(ifft(x, axis=-2), axis=-1).real
    ref = jnp.real(
        jnp.fft.ifft(jnp.fft.ifft(hidden_state.astype(jnp.complex64), axis=-2), axis=-1)
    )
    assert out.shape == (B, N, M)
    assert jnp.max(jnp.abs(out - ref)) < 1e-4, "mismatch vs jnp.fft reference"

    print("KERNEL_OK")
</pallas_src>

<mosaic_0001>
module attributes {stable_mosaic.version = 11 : i64} {
  func.func @kernel(%arg0: i32, %arg1: memref<16x32xf32, #tpu.memory_space<vmem>>, %arg2: memref<32x32xf32, #tpu.memory_space<vmem>>, %arg3: memref<32x32xf32, #tpu.memory_space<vmem>>, %arg4: memref<8x8xf32, #tpu.memory_space<vmem>>, %arg5: memref<8x8xf32, #tpu.memory_space<vmem>>, %arg6: memref<16x32xf32, #tpu.memory_space<vmem>>) attributes {dimension_semantics = [#tpu.dimension_semantics<parallel>], iteration_bounds = array<i64: 1>, scalar_prefetch = 0 : i64, scratch_operands = 0 : i64, tpu.core_type = #tpu.core_type<tc>, window_params = [{transform_indices = @transform_0, window_bounds = array<i64: 16, 32>}, {pipeline_mode = #tpu.pipeline_mode<synchronous>, transform_indices = @transform_1, window_bounds = array<i64: 32, 32>}, {pipeline_mode = #tpu.pipeline_mode<synchronous>, transform_indices = @transform_2, window_bounds = array<i64: 32, 32>}, {pipeline_mode = #tpu.pipeline_mode<synchronous>, transform_indices = @transform_3, window_bounds = array<i64: 8, 8>}, {pipeline_mode = #tpu.pipeline_mode<synchronous>, transform_indices = @transform_4, window_bounds = array<i64: 8, 8>}, {transform_indices = @transform_5, window_bounds = array<i64: 16, 32>}]} {
    %c0 = arith.constant 0 : index
    %c0_0 = arith.constant 0 : index
    %0 = vector.load %arg1[%c0, %c0_0] : memref<16x32xf32, #tpu.memory_space<vmem>>, vector<16x32xf32>
    %c0_1 = arith.constant 0 : index
    %c0_2 = arith.constant 0 : index
    %1 = vector.load %arg2[%c0_1, %c0_2] : memref<32x32xf32, #tpu.memory_space<vmem>>, vector<32x32xf32>
    %cst = arith.constant dense<0.000000e+00> : vector<16x32xf32>
    %2 = tpu.matmul %0, %1, %cst {dimension_numbers = #tpu.dot_dimension_numbers<[1], [0], [0], [1], [0, 0, 1, 1], [], []>} : vector<16x32xf32>, vector<32x32xf32>, vector<16x32xf32> -> vector<16x32xf32>
    %c0_3 = arith.constant 0 : index
    %c0_4 = arith.constant 0 : index
    %3 = vector.load %arg3[%c0_3, %c0_4] : memref<32x32xf32, #tpu.memory_space<vmem>>, vector<32x32xf32>
    %cst_5 = arith.constant dense<0.000000e+00> : vector<16x32xf32>
    %4 = tpu.matmul %0, %3, %cst_5 {dimension_numbers = #tpu.dot_dimension_numbers<[1], [0], [0], [1], [0, 0, 1, 1], [], []>} : vector<16x32xf32>, vector<32x32xf32>, vector<16x32xf32> -> vector<16x32xf32>
    %c0_6 = arith.constant 0 : index
    %c0_7 = arith.constant 0 : index
    %5 = vector.load %arg4[%c0_6, %c0_7] : memref<8x8xf32, #tpu.memory_space<vmem>>, vector<8x8xf32>
    %c0_8 = arith.constant 0 : index
    %c0_9 = arith.constant 0 : index
    %6 = vector.load %arg5[%c0_8, %c0_9] : memref<8x8xf32, #tpu.memory_space<vmem>>, vector<8x8xf32>
    %7 = vector.extract_strided_slice %2 {offsets = [0, 0], sizes = [8, 32], strides = [1, 1]} : vector<16x32xf32> to vector<8x32xf32>
    %8 = vector.extract_strided_slice %4 {offsets = [0, 0], sizes = [8, 32], strides = [1, 1]} : vector<16x32xf32> to vector<8x32xf32>
    %cst_10 = arith.constant dense<0.000000e+00> : vector<8x32xf32>
    %9 = tpu.matmul %5, %7, %cst_10 {dimension_numbers = #tpu.dot_dimension_numbers<[1], [0], [0], [1], [0, 0, 1, 1], [], []>} : vector<8x8xf32>, vector<8x32xf32>, vector<8x32xf32> -> vector<8x32xf32>
    %cst_11 = arith.constant dense<0.000000e+00> : vector<8x32xf32>
    %10 = tpu.matmul %6, %8, %cst_11 {dimension_numbers = #tpu.dot_dimension_numbers<[1], [0], [0], [1], [0, 0, 1, 1], [], []>} : vector<8x8xf32>, vector<8x32xf32>, vector<8x32xf32> -> vector<8x32xf32>
    %11 = arith.addf %9, %10 : vector<8x32xf32>
    %c0_12 = arith.constant 0 : index
    %c0_13 = arith.constant 0 : index
    %12 = vector.load %arg6[%c0_12, %c0_13] : memref<16x32xf32, #tpu.memory_space<vmem>>, vector<8x32xf32>
    tpu.vector_store %arg6[%c0_12, %c0_13], %11 {strides = array<i32>} : memref<16x32xf32, #tpu.memory_space<vmem>>, vector<8x32xf32>,
    %13 = vector.extract_strided_slice %2 {offsets = [8, 0], sizes = [8, 32], strides = [1, 1]} : vector<16x32xf32> to vector<8x32xf32>
    %14 = vector.extract_strided_slice %4 {offsets = [8, 0], sizes = [8, 32], strides = [1, 1]} : vector<16x32xf32> to vector<8x32xf32>
    %cst_14 = arith.constant dense<0.000000e+00> : vector<8x32xf32>
    %15 = tpu.matmul %5, %13, %cst_14 {dimension_numbers = #tpu.dot_dimension_numbers<[1], [0], [0], [1], [0, 0, 1, 1], [], []>} : vector<8x8xf32>, vector<8x32xf32>, vector<8x32xf32> -> vector<8x32xf32>
    %cst_15 = arith.constant dense<0.000000e+00> : vector<8x32xf32>
    %16 = tpu.matmul %6, %14, %cst_15 {dimension_numbers = #tpu.dot_dimension_numbers<[1], [0], [0], [1], [0, 0, 1, 1], [], []>} : vector<8x8xf32>, vector<8x32xf32>, vector<8x32xf32> -> vector<8x32xf32>
    %17 = arith.addf %15, %16 : vector<8x32xf32>
    %c8 = arith.constant 8 : index
    %c0_16 = arith.constant 0 : index
    %18 = vector.load %arg6[%c8, %c0_16] : memref<16x32xf32, #tpu.memory_space<vmem>>, vector<8x32xf32>
    tpu.vector_store %arg6[%c8, %c0_16], %17 {strides = array<i32>} : memref<16x32xf32, #tpu.memory_space<vmem>>, vector<8x32xf32>,
    return
  }
  func.func @transform_0(%arg0: i32) -> (i32, i32) {
    %c0_i32 = arith.constant 0 : i32
    %c0_i32_0 = arith.constant 0 : i32
    return %arg0, %c0_i32 : i32, i32
  }
  func.func @transform_1(%arg0: i32) -> (i32, i32) {
    %c0_i32 = arith.constant 0 : i32
    %c0_i32_0 = arith.constant 0 : i32
    %c0_i32_1 = arith.constant 0 : i32
    return %c0_i32, %c0_i32_0 : i32, i32
  }
  func.func @transform_2(%arg0: i32) -> (i32, i32) {
    %c0_i32 = arith.constant 0 : i32
    %c0_i32_0 = arith.constant 0 : i32
    %c0_i32_1 = arith.constant 0 : i32
    return %c0_i32, %c0_i32_0 : i32, i32
  }
  func.func @transform_3(%arg0: i32) -> (i32, i32) {
    %c0_i32 = arith.constant 0 : i32
    %c0_i32_0 = arith.constant 0 : i32
    %c0_i32_1 = arith.constant 0 : i32
    return %c0_i32, %c0_i32_0 : i32, i32
  }
  func.func @transform_4(%arg0: i32) -> (i32, i32) {
    %c0_i32 = arith.constant 0 : i32
    %c0_i32_0 = arith.constant 0 : i32
    %c0_i32_1 = arith.constant 0 : i32
    return %c0_i32, %c0_i32_0 : i32, i32
  }
  func.func @transform_5(%arg0: i32) -> (i32, i32) {
    %c0_i32 = arith.constant 0 : i32
    %c0_i32_0 = arith.constant 0 : i32
    return %arg0, %c0_i32 : i32, i32
  }
}

</mosaic_0001>

<llo_original>
// kernel: tpu_custom_call.1
$region0: #{tpu_custom_call.1}
  #allocation0 [shape = 'u32[]', space=smem, size = 0x4, offset = 0x4, fixed_abs, tag = 'smem constant byte address 0x4 - core index']
  #allocation1 [shape = 'u32[72,128]{1,0:T(1,128)}', space=vmem, size = 0x9000, scoped, tag = 'internal scratch']
  %s0 = inlined_call_operand.hbm [shape: f32[16,32], index: 0, kind: input, shape index: {}]
  %s1 = inlined_call_operand.hbm [shape: f32[32,32], index: 1, kind: input, shape index: {}]
  %s2 = inlined_call_operand.hbm [shape: f32[32,32], index: 2, kind: input, shape index: {}]
  %s3 = inlined_call_operand.hbm [shape: f32[8,8], index: 3, kind: input, shape index: {}]
  %s4 = inlined_call_operand.hbm [shape: f32[8,8], index: 4, kind: input, shape index: {}]
  %s5 = inlined_call_operand.hbm [shape: f32[16,32], index: 5, kind: output, shape index: {}]
  %s6 = sld [smem:[#allocation0]]
  $region50: #{tpu_custom_call.1} parent=0
    _
  %s8 = ssub.s32 1, %s6
  %s9 = scalar_select 0, %s8, %s6
  $region1: #{tpu_custom_call.1} parent=0
    #allocation2 [shape = 'u8[8192]{0}', space=vmem, size = 0x2000, scoped, tag = 'input window, operand 0, single buffered']
    #allocation3 [shape = 's32[1]{0}', space=sflag, size = 0x4, scoped, tag = 'scoped memory for tpu_custom_call.1']
    #allocation4 [shape = 's32[1]{0}', space=sflag, size = 0x4, scoped, tag = 'scoped memory for tpu_custom_call.1']
    #allocation5 [shape = 'u8[16384]{0}', space=vmem, size = 0x4000, scoped, tag = 'input window, operand 1, single buffered']
    #allocation6 [shape = 's32[1]{0}', space=sflag, size = 0x4, scoped, tag = 'scoped memory for tpu_custom_call.1']
    #allocation7 [shape = 'u8[16384]{0}', space=vmem, size = 0x4000, scoped, tag = 'input window, operand 2, single buffered']
    #allocation8 [shape = 'u8[4096]{0}', space=vmem, size = 0x1000, scoped, tag = 'input window, operand 3, single buffered']
    #allocation9 [shape = 's32[1]{0}', space=sflag, size = 0x4, scoped, tag = 'scoped memory for tpu_custom_call.1']
    #allocation10 [shape = 'u8[4096]{0}', space=vmem, size = 0x1000, scoped, tag = 'input window, operand 4, single buffered']
    #allocation11 [shape = 'u8[8192]{0}', space=vmem, size = 0x2000, scoped, tag = 'output window, operand 0, single buffered']
    %10 = vsyncpa [#allocation3], 0
    %11 = vsyncpa [#allocation6], 0
    %12 = vsyncpa [#allocation9], 0
    %13 = vsyncpa [#allocation4], 0
    // Predicated region
    $region2: #{tpu_custom_call.1} parent=1 // pred_check
      _
    $region3: #{tpu_custom_call.1} parent=1 // pred_check_branch
      %15 = sbr.rel (0) target = $region5
    $region4: #{tpu_custom_call.1} parent=1 // pred_region
      %17 = vsyncadd [#allocation3], 0
      %s18 = sshll.u32 %s0, 4
      %s19 = int_to_ptr.hbm [resolvable:$true] %s18
      %s20 = sshll.u32 [#allocation2], 4
      %s21 = int_to_ptr.vmem [resolvable:$true] %s20
      %26 = dma.hbm_to_vmem [thread:$0]  %s19, 256, %s21, [#allocation3], 128, 128, 8
    $region5: #{tpu_custom_call.1} parent=1 // pred_fallthru
      _
    // Predicated region
    $region6: #{tpu_custom_call.1} parent=1 // pred_check
      _
    $region7: #{tpu_custom_call.1} parent=1 // pred_check_branch
      %28 = sbr.rel (0) target = $region9
    $region8: #{tpu_custom_call.1} parent=1 // pred_region
      %30 = vsyncadd [#allocation6], 0
      %s31 = sshll.u32 %s1, 4
      %s32 = int_to_ptr.hbm [resolvable:$true] %s31
      %s33 = sshll.u32 [#allocation5], 4
      %s34 = int_to_ptr.vmem [resolvable:$true] %s33
      %39 = dma.hbm_to_vmem [thread:$0]  %s32, 512, %s34, [#allocation6], 128, 128, 8
    $region9: #{tpu_custom_call.1} parent=1 // pred_fallthru
      _
    // Predicated region
    $region10: #{tpu_custom_call.1} parent=1 // pred_check
      _
    $region11: #{tpu_custom_call.1} parent=1 // pred_check_branch
      %41 = sbr.rel (0) target = $region13
    $region12: #{tpu_custom_call.1} parent=1 // pred_region
      %43 = vsyncadd [#allocation6], 0
      %s44 = sshll.u32 %s2, 4
      %s45 = int_to_ptr.hbm [resolvable:$true] %s44
      %s46 = sshll.u32 [#allocation7], 4
      %s47 = int_to_ptr.vmem [resolvable:$true] %s46
      %52 = dma.hbm_to_vmem [thread:$0]  %s45, 512, %s47, [#allocation6], 128, 128, 8
    $region13: #{tpu_custom_call.1} parent=1 // pred_fallthru
      _
    // Predicated region
    $region14: #{tpu_custom_call.1} parent=1 // pred_check
      _
    $region15: #{tpu_custom_call.1} parent=1 // pred_check_branch
      %54 = sbr.rel (0) target = $region17
    $region16: #{tpu_custom_call.1} parent=1 // pred_region
      %56 = vsyncadd [#allocation9], 0
      %s58 = sshll.u32 %s3, 4
      %s59 = int_to_ptr.hbm [resolvable:$true] %s58
      %s60 = sshll.u32 [#allocation8], 4
      %s61 = int_to_ptr.vmem [resolvable:$true] %s60
      %63 = dma.hbm_to_vmem [thread:$0]  %s59, 128, %s61, [#allocation9]
    $region17: #{tpu_custom_call.1} parent=1 // pred_fallthru
      _
    // Predicated region
    $region18: #{tpu_custom_call.1} parent=1 // pred_check
      _
    $region19: #{tpu_custom_call.1} parent=1 // pred_check_branch
      %65 = sbr.rel (0) target = $region21
    $region20: #{tpu_custom_call.1} parent=1 // pred_region
      %67 = vsyncadd [#allocation9], 0
      %s69 = sshll.u32 %s4, 4
      %s70 = int_to_ptr.hbm [resolvable:$true] %s69
      %s71 = sshll.u32 [#allocation10], 4
      %s72 = int_to_ptr.vmem [resolvable:$true] %s71
      %74 = dma.hbm_to_vmem [thread:$0]  %s70, 128, %s72, [#allocation9]
    $region21: #{tpu_custom_call.1} parent=1 // pred_fallthru
      _
    // Predicated region
    $region22: #{tpu_custom_call.1} parent=1 // pred_check
      _
    $region23: #{tpu_custom_call.1} parent=1 // pred_check_branch
      %76 = sbr.rel (0) target = $region25
    $region24: #{tpu_custom_call.1} parent=1 // pred_region
      %78 = dma.done [#allocation3], 256
    $region25: #{tpu_custom_call.1} parent=1 // pred_fallthru
      _
    // Predicated region
    $region26: #{tpu_custom_call.1} parent=1 // pred_check
      _
    $region27: #{tpu_custom_call.1} parent=1 // pred_check_branch
      %80 = sbr.rel (0) target = $region29
    $region28: #{tpu_custom_call.1} parent=1 // pred_region
      %82 = dma.done [#allocation6], 512
    $region29: #{tpu_custom_call.1} parent=1 // pred_fallthru
      _
    // Predicated region
    $region30: #{tpu_custom_call.1} parent=1 // pred_check
      _
    $region31: #{tpu_custom_call.1} parent=1 // pred_check_branch
      %84 = sbr.rel (0) target = $region33
    $region32: #{tpu_custom_call.1} parent=1 // pred_region
      %86 = dma.done [#allocation6], 512
    $region33: #{tpu_custom_call.1} parent=1 // pred_fallthru
      _
    // Predicated region
    $region34: #{tpu_custom_call.1} parent=1 // pred_check
      _
    $region35: #{tpu_custom_call.1} parent=1 // pred_check_branch
      %88 = sbr.rel (0) target = $region37
    $region36: #{tpu_custom_call.1} parent=1 // pred_region
      %90 = dma.done [#allocation9], 128
    $region37: #{tpu_custom_call.1} parent=1 // pred_fallthru
      _
    // Predicated region
    $region38: #{tpu_custom_call.1} parent=1 // pred_check
      _
    $region39: #{tpu_custom_call.1} parent=1 // pred_check_branch
      %92 = sbr.rel (0) target = $region41
    $region40: #{tpu_custom_call.1} parent=1 // pred_region
      %94 = dma.done [#allocation9], 128
    $region41: #{tpu_custom_call.1} parent=1 // pred_fallthru
      _
    %v95 = vld [vmem:[#allocation2] sm:$0xff]
    %v96 = vld [vmem:[#allocation2 + $0x8] sm:$0xff]
    %v97 = vld [vmem:[#allocation5] sm:$0xff]
    %v98 = vld [vmem:[#allocation5 + $0x8] sm:$0xff]
    %v99 = vld [vmem:[#allocation5 + $0x10] sm:$0xff]
    %v100 = vld [vmem:[#allocation5 + $0x18] sm:$0xff]
    %vm101 = vcmask 261120
    %v103 = vsel %vm101, %v95, 0
    %v106 = vsel %vm101, %v96, 0
    %108 = vmatpush.msra.mxu0 0.0
    %109 = vmatpush.msra.mxu0 0.0
    %110 = vmatpush.msra.mxu0 0.0
    %111 = vmatpush.msra.mxu0 0.0
    %112 = vmatpush.msra.mxu0 0.0
    %113 = vmatpush.msra.mxu0 0.0
    %114 = vmatpush.msra.mxu0 0.0
    %115 = vmatpush.msra.mxu0 0.0
    %116 = vmatpush.msra.mxu0 0.0
    %117 = vmatpush.msra.mxu0 0.0
    %118 = vmatpush.msra.mxu0 0.0
    %119 = vmatpush.msra.mxu0 0.0
    %120 = vmatpush.msra.mxu0 %v100
    %121 = vmatpush.msra.mxu0 %v99
    %122 = vmatpush.msra.mxu0 %v98
    %123 = vmatpush.msra.mxu0 %v97
    %124 = vmatmul.f32.gmra.mxu0 %v103
    %v125 = vpop.f32.mrf.mxu0
    %v126 = vadd.f32 0.0, %v125
    %127 = vmatmul.f32.gmra.mxu0 %v106
    %v128 = vpop.f32.mrf.mxu0
    %v129 = vadd.f32 0.0, %v128
    %130 = vdwg.mxu0
    %v131 = vld [vmem:[#allocation7] sm:$0xff]
    %v132 = vld [vmem:[#allocation7 + $0x8] sm:$0xff]
    %v133 = vld [vmem:[#allocation7 + $0x10] sm:$0xff]
    %v134 = vld [vmem:[#allocation7 + $0x18] sm:$0xff]
    %135 = vmatpush.msra.mxu0 0.0
    %136 = vmatpush.msra.mxu0 0.0
    %137 = vmatpush.msra.mxu0 0.0
    %138 = vmatpush.msra.mxu0 0.0
    %139 = vmatpush.msra.mxu0 0.0
    %140 = vmatpush.msra.mxu0 0.0
    %141 = vmatpush.msra.mxu0 0.0
    %142 = vmatpush.msra.mxu0 0.0
    %143 = vmatpush.msra.mxu0 0.0
    %144 = vmatpush.msra.mxu0 0.0
    %145 = vmatpush.msra.mxu0 0.0
    %146 = vmatpush.msra.mxu0 0.0
    %147 = vmatpush.msra.mxu0 %v134
    %148 = vmatpush.msra.mxu0 %v133
    %149 = vmatpush.msra.mxu0 %v132
    %150 = vmatpush.msra.mxu0 %v131
    %151 = vmatmul.f32.gmra.mxu0 %v103
    %v152 = vpop.f32.mrf.mxu0
    %v153 = vadd.f32 0.0, %v152
    %154 = vmatmul.f32.gmra.mxu0 %v106
    %v155 = vpop.f32.mrf.mxu0
    %v156 = vadd.f32 0.0, %v155
    %157 = vdwg.mxu0
    %v158 = vld [vmem:[#allocation8] sm:$0xff]
    %v159 = vld [vmem:[#allocation10] sm:$0xff]
    %vm160 = vcmask 64512
    %v162 = vsel %vm160, %v159, 0
    %164 = vmatpush.msra.mxu0 0.0
    %165 = vmatpush.msra.mxu0 0.0
    %166 = vmatpush.msra.mxu0 0.0
    %167 = vmatpush.msra.mxu0 0.0
    %168 = vmatpush.msra.mxu0 0.0
    %169 = vmatpush.msra.mxu0 0.0
    %170 = vmatpush.msra.mxu0 0.0
    %171 = vmatpush.msra.mxu0 0.0
    %172 = vmatpush.msra.mxu0 0.0
    %173 = vmatpush.msra.mxu0 0.0
    %174 = vmatpush.msra.mxu0 0.0
    %175 = vmatpush.msra.mxu0 0.0
    %176 = vmatpush.msra.mxu0 0.0
    %177 = vmatpush.msra.mxu0 0.0
    %178 = vmatpush.msra.mxu0 0.0
    %179 = vmatpush.msra.mxu0 %v153
    %180 = vmatmul.f32.gmra.mxu0 %v162
    %v181 = vpop.f32.mrf.mxu0
    %v182 = vadd.f32 0.0, %v181
    %183 = vdwg.mxu0
    %v185 = vsel %vm160, %v158, 0
    %187 = vmatpush.msra.mxu0 0.0
    %188 = vmatpush.msra.mxu0 0.0
    %189 = vmatpush.msra.mxu0 0.0
    %190 = vmatpush.msra.mxu0 0.0
    %191 = vmatpush.msra.mxu0 0.0
    %192 = vmatpush.msra.mxu0 0.0
    %193 = vmatpush.msra.mxu0 0.0
    %194 = vmatpush.msra.mxu0 0.0
    %195 = vmatpush.msra.mxu0 0.0
    %196 = vmatpush.msra.mxu0 0.0
    %197 = vmatpush.msra.mxu0 0.0
    %198 = vmatpush.msra.mxu0 0.0
    %199 = vmatpush.msra.mxu0 0.0
    %200 = vmatpush.msra.mxu0 0.0
    %201 = vmatpush.msra.mxu0 0.0
    %202 = vmatpush.msra.mxu0 %v126
    %203 = vmatmul.f32.gmra.mxu0 %v185
    %v204 = vpop.f32.mrf.mxu0
    %v205 = vadd.f32 %v182, %v204
    %206 = vdwg.mxu0
    %207 = vst.msk [vmem:[#allocation11] sm:$0xff] %vm101, %v205
    %208 = vmatpush.msra.mxu0 0.0
    %209 = vmatpush.msra.mxu0 0.0
    %210 = vmatpush.msra.mxu0 0.0
    %211 = vmatpush.msra.mxu0 0.0
    %212 = vmatpush.msra.mxu0 0.0
    %213 = vmatpush.msra.mxu0 0.0
    %214 = vmatpush.msra.mxu0 0.0
    %215 = vmatpush.msra.mxu0 0.0
    %216 = vmatpush.msra.mxu0 0.0
    %217 = vmatpush.msra.mxu0 0.0
    %218 = vmatpush.msra.mxu0 0.0
    %219 = vmatpush.msra.mxu0 0.0
    %220 = vmatpush.msra.mxu0 0.0
    %221 = vmatpush.msra.mxu0 0.0
    %222 = vmatpush.msra.mxu0 0.0
    %223 = vmatpush.msra.mxu0 %v156
    %224 = vmatmul.f32.gmra.mxu0 %v162
    %v225 = vpop.f32.mrf.mxu0
    %v226 = vadd.f32 0.0, %v225
    %227 = vdwg.mxu0
    %228 = vmatpush.msra.mxu0 0.0
    %229 = vmatpush.msra.mxu0 0.0
    %230 = vmatpush.msra.mxu0 0.0
    %231 = vmatpush.msra.mxu0 0.0
    %232 = vmatpush.msra.mxu0 0.0
    %233 = vmatpush.msra.mxu0 0.0
    %234 = vmatpush.msra.mxu0 0.0
    %235 = vmatpush.msra.mxu0 0.0
    %236 = vmatpush.msra.mxu0 0.0
    %237 = vmatpush.msra.mxu0 0.0
    %238 = vmatpush.msra.mxu0 0.0
    %239 = vmatpush.msra.mxu0 0.0
    %240 = vmatpush.msra.mxu0 0.0
    %241 = vmatpush.msra.mxu0 0.0
    %242 = vmatpush.msra.mxu0 0.0
    %243 = vmatpush.msra.mxu0 %v129
    %244 = vmatmul.f32.gmra.mxu0 %v185
    %v245 = vpop.f32.mrf.mxu0
    %v246 = vadd.f32 %v226, %v245
    %247 = vdwg.mxu0
    %248 = vst.msk [vmem:[#allocation11 + $0x8] sm:$0xff] %vm101, %v246
    // Predicated region
    $region42: #{tpu_custom_call.1} parent=1 // pred_check
      _
    $region43: #{tpu_custom_call.1} parent=1 // pred_check_branch
      %250 = sbr.rel (0) target = $region45
    $region44: #{tpu_custom_call.1} parent=1 // pred_region
      %252 = vsyncadd [#allocation4], 0
      %s253 = sshll.u32 [#allocation11], 4
      %s254 = int_to_ptr.vmem [resolvable:$true] %s253
      %s255 = sshll.u32 %s5, 4
      %s256 = int_to_ptr.hbm [resolvable:$true] %s255
      %261 = dma.vmem_to_hbm [thread:$0]  %s254, 256, %s256, [#allocation4], 128, 128, 8
    $region45: #{tpu_custom_call.1} parent=1 // pred_fallthru
      _
    // Predicated region
    $region46: #{tpu_custom_call.1} parent=1 // pred_check
      _
    $region47: #{tpu_custom_call.1} parent=1 // pred_check_branch
      %263 = sbr.rel (0) target = $region49
    $region48: #{tpu_custom_call.1} parent=1 // pred_region
      %265 = dma.done [#allocation4], 256
    $region49: #{tpu_custom_call.1} parent=1 // pred_fallthru
      _
    %266 = vsyncpa [#allocation3], 1
    %267 = vsyncpa [#allocation6], 1
    %268 = vsyncpa [#allocation9], 1
    %269 = vsyncpa [#allocation4], 1

</llo_original>
